<compile_context>
chip_gen: v7x
topology: tpu7x:2x2x1
jax: 0.10.0
libtpu: 0.0.40
codegen_flags: <defaults>
</compile_context>

<pallas_src>
import jax
import jax.numpy as jnp
from jax.experimental import pallas as pl
from jax.experimental.pallas import tpu as pltpu

C_IN, C_MID, C_OUT = 3, 30, 40

LANE = 128            # pixel tiles are padded to a multiple of the lane width
MAX_TILE_M = 16384    # pixels per grid step (≈6 MiB double-buffered — fits all gens)
SPLIT_M = 8192        # padded pixels per image >= this → emit >=2 grid steps so
                      # v7x can shard the pixel axis across its 2 TensorCores

# Packed parameter slab: one (104, 32) f32 array holding all weights + biases.
#   rows [ 0: 30) cols [0: 3) = W1, col 31 = b1
#   rows [32: 62) cols [0:30) = W2, col 31 = b2
#   rows [64:104) cols [0:30) = W3, col 31 = b3
# Row offsets are multiples of 8 so every in-kernel static slice is sublane-aligned.
R1, R2, R3 = 0, 32, 64
P_ROWS, P_COLS = 104, 32
B_COL = P_COLS - 1


def _tanh_mlp_kernel(x_ref, p_ref, o_ref):
    # x_ref: (1, C_IN, TILE_M)  -- channels on sublane, pixels on lane.
    # p_ref: (P_ROWS, P_COLS)   -- packed weights/biases, resident every step.
    # o_ref: (1, C_OUT, TILE_M).
    x = x_ref[0]

    # Static slices of the parameter slab (aligned views, essentially free).
    w1 = p_ref[R1:R1 + C_MID, 0:C_IN]
    b1 = p_ref[R1:R1 + C_MID, B_COL:B_COL + 1]
    w2 = p_ref[R2:R2 + C_MID, 0:C_MID]
    b2 = p_ref[R2:R2 + C_MID, B_COL:B_COL + 1]
    w3 = p_ref[R3:R3 + C_OUT, 0:C_MID]
    b3 = p_ref[R3:R3 + C_OUT, B_COL:B_COL + 1]

    h = jnp.tanh(jnp.dot(w1, x, preferred_element_type=jnp.float32) + b1)
    h = jnp.tanh(jnp.dot(w2, h, preferred_element_type=jnp.float32) + b2)
    y = jnp.tanh(jnp.dot(w3, h, preferred_element_type=jnp.float32) + b3)
    o_ref[0] = y.astype(o_ref.dtype)


def _choose_tile(m):
    """Lane-aligned pixel tile per image.

    Small images collapse to a single grid step (no per-step overhead); images
    large enough to be HBM-bound get >= 2 steps (v7x megacore sharding), capped
    at MAX_TILE_M.
    """
    m_pad = -(-m // LANE) * LANE
    if m_pad < SPLIT_M:
        return m_pad, m_pad                       # single grid step per image
    tile = min(MAX_TILE_M, -(-m_pad // (2 * LANE)) * LANE)
    m_pad = -(-m_pad // tile) * tile
    return tile, m_pad


def pack_params(params):
    """Pack (w1,b1,w2,b2,w3,b3) into the single (P_ROWS, P_COLS) slab."""
    w1, b1, w2, b2, w3, b3 = params
    slab = jnp.zeros((P_ROWS, P_COLS), jnp.float32)
    slab = slab.at[R1:R1 + C_MID, 0:C_IN].set(w1)
    slab = slab.at[R1:R1 + C_MID, B_COL].set(b1)
    slab = slab.at[R2:R2 + C_MID, 0:C_MID].set(w2)
    slab = slab.at[R2:R2 + C_MID, B_COL].set(b2)
    slab = slab.at[R3:R3 + C_OUT, 0:C_MID].set(w3)
    slab = slab.at[R3:R3 + C_OUT, B_COL].set(b3)
    return slab


def model_tanh_forward(x_nchw, params):
    """x_nchw: (N, 3, H, W) float32. Returns (N, 40, H, W) float32."""
    N, C, H, W = x_nchw.shape
    assert C == C_IN
    M = H * W

    w_slab = pack_params(params)

    # NCHW -> (N, C, H*W) is a pure reshape (no transpose, any N).
    x_cm = x_nchw.reshape(N, C_IN, M)

    tile_m, m_pad = _choose_tile(M)
    if m_pad != M:
        x_cm = jnp.pad(x_cm, ((0, 0), (0, 0), (0, m_pad - M)))

    grid = (N, m_pad // tile_m)

    out_cm = pl.pallas_call(
        _tanh_mlp_kernel,
        out_shape=jax.ShapeDtypeStruct((N, C_OUT, m_pad), jnp.float32),
        grid_spec=pltpu.PrefetchScalarGridSpec(
            num_scalar_prefetch=0,
            grid=grid,
            in_specs=[
                # Input tile: batch block of 1, all channels, tile_m pixels.
                pl.BlockSpec((1, C_IN, tile_m), lambda n, i: (n, 0, i)),
                # Single packed-parameter slab, resident across all steps.
                pl.BlockSpec((P_ROWS, P_COLS), lambda n, i: (0, 0)),
            ],
            out_specs=pl.BlockSpec((1, C_OUT, tile_m), lambda n, i: (n, 0, i)),
        ),
        compiler_params=pltpu.CompilerParams(
            # Every output tile is independent → both axes parallel (lets v7x
            # shard batch and/or pixel tiles across its 2 TensorCores).
            dimension_semantics=("parallel", "parallel"),
        ),
    )(x_cm, w_slab)

    out_cm = out_cm[:, :, :M]
    return out_cm.reshape(N, C_OUT, H, W)


def init_params(key):
    """Deterministic init matching the Conv2d layer shapes (kernel size 1).

    Weights are stored (Cout, Cin) -- same as PyTorch's (Cout, Cin, 1, 1)
    squeezed -- which is exactly the layout the channels-first kernel wants.
    """
    ks = jax.random.split(key, 6)

    def conv_init(kw, kb, cin, cout):
        # PyTorch Conv2d default: U(-1/sqrt(fan_in), 1/sqrt(fan_in)), fan_in = cin
        bound = 1.0 / jnp.sqrt(jnp.float32(cin))
        w = jax.random.uniform(kw, (cout, cin), jnp.float32, -bound, bound)
        b = jax.random.uniform(kb, (cout,), jnp.float32, -bound, bound)
        return w, b

    w1, b1 = conv_init(ks[0], ks[1], C_IN, C_MID)
    w2, b2 = conv_init(ks[2], ks[3], C_MID, C_MID)
    w3, b3 = conv_init(ks[4], ks[5], C_MID, C_OUT)
    return (w1, b1, w2, b2, w3, b3)


def reference_forward(x_nchw, params):
    """Plain-JAX reference (same math) for correctness checking."""
    w1, b1, w2, b2, w3, b3 = params

    def conv1x1(x, w, b):
        return jnp.einsum("nchw,oc->nohw", x, w) + b[None, :, None, None]

    h = jnp.tanh(conv1x1(x_nchw, w1, b1))
    h = jnp.tanh(conv1x1(h, w2, b2))
    return jnp.tanh(conv1x1(h, w3, b3))


if __name__ == "__main__":
    key = jax.random.PRNGKey(0)
    k_x, k_p, k_x2 = jax.random.split(key, 3)

    params = init_params(k_p)

    # Same shape as the module's example input: (1, 3, 32, 32)
    x = jax.random.normal(k_x, (1, 3, 32, 32), dtype=jnp.float32)
    out = jax.block_until_ready(model_tanh_forward(x, params))
    ref = reference_forward(x, params)
    assert out.shape == (1, 40, 32, 32), out.shape
    assert jnp.allclose(out, ref, atol=1e-5, rtol=1e-5), "mismatch vs reference (N=1)"

    # Exercise the batched (grid batch-axis, transpose-free) path too.
    x2 = jax.random.normal(k_x2, (2, 3, 16, 16), dtype=jnp.float32)
    out2 = jax.block_until_ready(model_tanh_forward(x2, params))
    ref2 = reference_forward(x2, params)
    assert out2.shape == (2, 40, 16, 16), out2.shape
    assert jnp.allclose(out2, ref2, atol=1e-5, rtol=1e-5), "mismatch vs reference (N=2)"

    print("KERNEL_OK")
</pallas_src>

<mosaic_0001>
module attributes {stable_mosaic.version = 11 : i64} {
  func.func @_tanh_mlp_kernel(%arg0: i32, %arg1: i32, %arg2: memref<1x3x1024xf32, #tpu.memory_space<vmem>>, %arg3: memref<104x32xf32, #tpu.memory_space<vmem>>, %arg4: memref<1x40x1024xf32, #tpu.memory_space<vmem>>) attributes {dimension_semantics = [#tpu.dimension_semantics<parallel>, #tpu.dimension_semantics<parallel>], iteration_bounds = array<i64: 1, 1>, scalar_prefetch = 0 : i64, scratch_operands = 0 : i64, tpu.core_type = #tpu.core_type<tc>, window_params = [{transform_indices = @transform_0, window_bounds = array<i64: 1, 3, 1024>}, {pipeline_mode = #tpu.pipeline_mode<synchronous>, transform_indices = @transform_1, window_bounds = array<i64: 104, 32>}, {transform_indices = @transform_2, window_bounds = array<i64: 1, 40, 1024>}]} {
    %c0 = arith.constant 0 : index
    %c0_0 = arith.constant 0 : index
    %c0_1 = arith.constant 0 : index
    %0 = vector.load %arg2[%c0, %c0_0, %c0_1] : memref<1x3x1024xf32, #tpu.memory_space<vmem>>, vector<1x3x1024xf32>
    %1 = vector.shape_cast %0 : vector<1x3x1024xf32> to vector<3x1024xf32>
    %c0_2 = arith.constant 0 : index
    %c0_3 = arith.constant 0 : index
    %2 = vector.load %arg3[%c0_2, %c0_3] : memref<104x32xf32, #tpu.memory_space<vmem>>, vector<30x3xf32>
    %c0_4 = arith.constant 0 : index
    %c31 = arith.constant 31 : index
    %3 = vector.load %arg3[%c0_4, %c31] : memref<104x32xf32, #tpu.memory_space<vmem>>, vector<30x1xf32>
    %c32 = arith.constant 32 : index
    %c0_5 = arith.constant 0 : index
    %4 = vector.load %arg3[%c32, %c0_5] : memref<104x32xf32, #tpu.memory_space<vmem>>, vector<30x30xf32>
    %c32_6 = arith.constant 32 : index
    %c31_7 = arith.constant 31 : index
    %5 = vector.load %arg3[%c32_6, %c31_7] : memref<104x32xf32, #tpu.memory_space<vmem>>, vector<30x1xf32>
    %c64 = arith.constant 64 : index
    %c0_8 = arith.constant 0 : index
    %6 = vector.load %arg3[%c64, %c0_8] : memref<104x32xf32, #tpu.memory_space<vmem>>, vector<40x30xf32>
    %c64_9 = arith.constant 64 : index
    %c31_10 = arith.constant 31 : index
    %7 = vector.load %arg3[%c64_9, %c31_10] : memref<104x32xf32, #tpu.memory_space<vmem>>, vector<40x1xf32>
    %cst = arith.constant dense<0.000000e+00> : vector<30x1024xf32>
    %8 = tpu.matmul %2, %1, %cst {dimension_numbers = #tpu.dot_dimension_numbers<[1], [0], [0], [1], [0, 0, 1, 1], [], []>} : vector<30x3xf32>, vector<3x1024xf32>, vector<30x1024xf32> -> vector<30x1024xf32>
    %9 = vector.broadcast %3 : vector<30x1xf32> to vector<30x1024xf32>
    %10 = arith.addf %8, %9 : vector<30x1024xf32>
    %11 = math.tanh %10 : vector<30x1024xf32>
    %cst_11 = arith.constant dense<0.000000e+00> : vector<30x1024xf32>
    %12 = tpu.matmul %4, %11, %cst_11 {dimension_numbers = #tpu.dot_dimension_numbers<[1], [0], [0], [1], [0, 0, 1, 1], [], []>} : vector<30x30xf32>, vector<30x1024xf32>, vector<30x1024xf32> -> vector<30x1024xf32>
    %13 = vector.broadcast %5 : vector<30x1xf32> to vector<30x1024xf32>
    %14 = arith.addf %12, %13 : vector<30x1024xf32>
    %15 = math.tanh %14 : vector<30x1024xf32>
    %cst_12 = arith.constant dense<0.000000e+00> : vector<40x1024xf32>
    %16 = tpu.matmul %6, %15, %cst_12 {dimension_numbers = #tpu.dot_dimension_numbers<[1], [0], [0], [1], [0, 0, 1, 1], [], []>} : vector<40x30xf32>, vector<30x1024xf32>, vector<40x1024xf32> -> vector<40x1024xf32>
    %17 = vector.broadcast %7 : vector<40x1xf32> to vector<40x1024xf32>
    %18 = arith.addf %16, %17 : vector<40x1024xf32>
    %19 = math.tanh %18 : vector<40x1024xf32>
    %c0_13 = arith.constant 0 : index
    %c0_14 = arith.constant 0 : index
    %c0_15 = arith.constant 0 : index
    %20 = vector.load %arg4[%c0_13, %c0_14, %c0_15] : memref<1x40x1024xf32, #tpu.memory_space<vmem>>, vector<1x40x1024xf32>
    %21 = vector.shape_cast %20 : vector<1x40x1024xf32> to vector<40x1024xf32>
    %22 = vector.shape_cast %19 : vector<40x1024xf32> to vector<1x40x1024xf32>
    tpu.vector_store %arg4[%c0_13, %c0_14, %c0_15], %22 {strides = array<i32>} : memref<1x40x1024xf32, #tpu.memory_space<vmem>>, vector<1x40x1024xf32>,
    return
  }
  func.func @transform_0(%arg0: i32, %arg1: i32) -> (i32, i32, i32) {
    %c0_i32 = arith.constant 0 : i32
    %c0_i32_0 = arith.constant 0 : i32
    return %arg0, %c0_i32, %arg1 : i32, i32, i32
  }
  func.func @transform_1(%arg0: i32, %arg1: i32) -> (i32, i32) {
    %c0_i32 = arith.constant 0 : i32
    %c0_i32_0 = arith.constant 0 : i32
    %c0_i32_1 = arith.constant 0 : i32
    return %c0_i32, %c0_i32_0 : i32, i32
  }
  func.func @transform_2(%arg0: i32, %arg1: i32) -> (i32, i32, i32) {
    %c0_i32 = arith.constant 0 : i32
    %c0_i32_0 = arith.constant 0 : i32
    return %arg0, %c0_i32, %arg1 : i32, i32, i32
  }
}

</mosaic_0001>

<llo_original>
// kernel: tpu_custom_call.1
$region0: #{tpu_custom_call.1}
  #allocation0 [shape = 'u32[]', space=smem, size = 0x4, offset = 0x4, fixed_abs, tag = 'smem constant byte address 0x4 - core index']
  #allocation1 [shape = 'u32[144,128]{1,0:T(1,128)}', space=vmem, size = 0x12000, scoped, tag = 'internal scratch']
  %s0 = inlined_call_operand.vmem [shape: f32[1,3,1024], index: 0, kind: input, shape index: {}]
  %s1 = inlined_call_operand.vmem [shape: f32[104,32], index: 1, kind: input, shape index: {}]
  %s2 = inlined_call_operand.hbm [shape: f32[1,40,1024], index: 2, kind: output, shape index: {}]
  %s3 = sld [smem:[#allocation0]]
  $region18: #{tpu_custom_call.1} parent=0
    _
  %s5 = ssub.s32 1, %s3
  %s6 = scalar_select 0, %s5, %s3
  $region1: #{tpu_custom_call.1} parent=0
    #allocation2 [shape = 'u8[163840]{0}', space=vmem, size = 0x28000, scoped, tag = 'output window, operand 0, single buffered']
    #allocation3 [shape = 's32[1]{0}', space=sflag, size = 0x4, scoped, tag = 'scoped memory for tpu_custom_call.1']
    %7 = vsyncpa [#allocation3], 0
    // Predicated region
    $region2: #{tpu_custom_call.1} parent=1 // pred_check
      _
    $region3: #{tpu_custom_call.1} parent=1 // pred_check_branch
      %9 = sbr.rel (0) target = $region5
    $region4: #{tpu_custom_call.1} parent=1 // pred_region
      _
    $region5: #{tpu_custom_call.1} parent=1 // pred_fallthru
      _
    // Predicated region
    $region6: #{tpu_custom_call.1} parent=1 // pred_check
      _
    $region7: #{tpu_custom_call.1} parent=1 // pred_check_branch
      %11 = sbr.rel (0) target = $region9
    $region8: #{tpu_custom_call.1} parent=1 // pred_region
      _
    $region9: #{tpu_custom_call.1} parent=1 // pred_fallthru
      _
    %v12 = vld [vmem:[%s0] sm:$0x77]
    %v13 = vld [vmem:[%s0 + $0x8] sm:$0x77]
    %v14 = vld [vmem:[%s0 + $0x10] sm:$0x77]
    %v15 = vld [vmem:[%s0 + $0x18] sm:$0x77]
    %v16 = vld [vmem:[%s1] sm:$0xff]
    %v17 = vld [vmem:[%s1 + $0x8] sm:$0xff]
    %v18 = vld [vmem:[%s1 + $0x10] sm:$0xff]
    %v19 = vld [vmem:[%s1 + $0x18] sm:$0x3f]
    %v20 = vld [vmem:[%s1 + $0x20] sm:$0xff]
    %v21 = vld [vmem:[%s1 + $0x28] sm:$0xff]
    %v22 = vld [vmem:[%s1 + $0x30] sm:$0xff]
    %v23 = vld [vmem:[%s1 + $0x38] sm:$0x3f]
    %v24 = vld [vmem:[%s1 + $0x40] sm:$0xff]
    %v25 = vld [vmem:[%s1 + $0x48] sm:$0xff]
    %v26 = vld [vmem:[%s1 + $0x50] sm:$0xff]
    %v27 = vld [vmem:[%s1 + $0x58] sm:$0xff]
    %v28 = vld [vmem:[%s1 + $0x60] sm:$0xff]
    %30 = vset.pattern.permute.xlu0 31
    %31 = vperm.xlu0 %30, %v16
    %v32 = vpop.permute.xlu0 %31
    %35 = vset.pattern.permute.xlu0 31
    %36 = vperm.xlu0 %35, %v17
    %v37 = vpop.permute.xlu0 %36
    %40 = vset.pattern.permute.xlu0 31
    %41 = vperm.xlu0 %40, %v18
    %v42 = vpop.permute.xlu0 %41
    %45 = vset.pattern.permute.xlu0 31
    %46 = vperm.xlu0 %45, %v19
    %v47 = vpop.permute.xlu0 %46
    %v53 = vcombine.high %v12, %v12
    %v54 = vcombine.high %v13, %v13
    %v55 = vcombine.high %v14, %v14
    %v56 = vcombine.high %v15, %v15
    %vm57 = vcmask 23552
    %v58 = vsel %vm57, %v16, 0
    %v60 = vsel %vm57, %v17, 0
    %v62 = vsel %vm57, %v18, 0
    %v64 = vsel %vm57, %v19, 0
    %vm66 = vcmask 1042432
    %v67 = vsel %vm66, %v12, 0
    %v69 = vsel %vm66, %v53, 0
    %v71 = vsel %vm66, %v13, 0
    %v73 = vsel %vm66, %v54, 0
    %v75 = vsel %vm66, %v14, 0
    %v77 = vsel %vm66, %v55, 0
    %v79 = vsel %vm66, %v15, 0
    %v81 = vsel %vm66, %v56, 0
    %83 = vmatprep.subr.mxu0 %v69
    %84 = vmatpush1.msra.mxu0 %v67
    %85 = vmatprep.subr.mxu0 0.0
    %86 = vmatpush1.msra.mxu0 0.0
    %87 = vmatprep.subr.mxu0 0.0
    %88 = vmatpush1.msra.mxu0 0.0
    %89 = vmatprep.subr.mxu0 0.0
    %90 = vmatpush1.msra.mxu0 0.0
    %91 = vmatprep.subr.mxu0 0.0
    %92 = vmatpush1.msra.mxu0 0.0
    %93 = vmatprep.subr.mxu0 0.0
    %94 = vmatpush1.msra.mxu0 0.0
    %95 = vmatprep.subr.mxu0 0.0
    %96 = vmatpush1.msra.mxu0 0.0
    %97 = vmatprep.subr.mxu0 0.0
    %98 = vmatpush1.msra.mxu0 0.0
    %99 = vmatprep.subr.mxu0 0.0
    %100 = vmatpush1.msra.mxu0 0.0
    %101 = vmatprep.subr.mxu0 0.0
    %102 = vmatpush1.msra.mxu0 0.0
    %103 = vmatprep.subr.mxu0 0.0
    %104 = vmatpush1.msra.mxu0 0.0
    %105 = vmatprep.subr.mxu0 0.0
    %106 = vmatpush1.msra.mxu0 0.0
    %107 = vmatprep.subr.mxu0 0.0
    %108 = vmatpush1.msra.mxu0 0.0
    %109 = vmatprep.subr.mxu0 0.0
    %110 = vmatpush1.msra.mxu0 0.0
    %111 = vmatprep.subr.mxu0 0.0
    %112 = vmatpush1.msra.mxu0 0.0
    %113 = vmatprep.subr.mxu0 0.0
    %114 = vmatpush1.msra.mxu0 0.0
    %115 = vmatprep.subr.mxu0 0.0
    %116 = vmatpush1.msra.mxu0 0.0
    %117 = vmatprep.subr.mxu0 0.0
    %118 = vmatpush1.msra.mxu0 0.0
    %119 = vmatprep.subr.mxu0 0.0
    %120 = vmatpush1.msra.mxu0 0.0
    %121 = vmatprep.subr.mxu0 0.0
    %122 = vmatpush1.msra.mxu0 0.0
    %123 = vmatprep.subr.mxu0 0.0
    %124 = vmatpush1.msra.mxu0 0.0
    %125 = vmatprep.subr.mxu0 0.0
    %126 = vmatpush1.msra.mxu0 0.0
    %127 = vmatprep.subr.mxu0 0.0
    %128 = vmatpush1.msra.mxu0 0.0
    %129 = vmatprep.subr.mxu0 0.0
    %130 = vmatpush1.msra.mxu0 0.0
    %131 = vmatprep.subr.mxu0 0.0
    %132 = vmatpush1.msra.mxu0 0.0
    %133 = vmatprep.subr.mxu0 0.0
    %134 = vmatpush1.msra.mxu0 0.0
    %135 = vmatprep.subr.mxu0 0.0
    %136 = vmatpush1.msra.mxu0 0.0
    %137 = vmatprep.subr.mxu0 0.0
    %138 = vmatpush1.msra.mxu0 0.0
    %139 = vmatprep.subr.mxu0 0.0
    %140 = vmatpush1.msra.mxu0 0.0
    %141 = vmatprep.subr.mxu0 0.0
    %142 = vmatpush1.msra.mxu0 0.0
    %143 = vmatprep.subr.mxu0 0.0
    %144 = vmatpush1.msra.mxu0 0.0
    %145 = vmatprep.subr.mxu0 0.0
    %146 = vmatpush1.msra.mxu0 0.0
    %147 = vmatprep.mubr.f32.mxu0 0.0
    %148 = vmatmul.mubr.f32.gmra.mrb[0].mxu0 %v58
    %v149 = vpop.f32.mrb[0].mxu0
    %v150 = vadd.f32 %v32, %v149
    %v151 = vpop.f32.mrb[0].mxu0
    %v152 = vadd.f32 %v32, %v151
    %153 = vmatprep.mubr.f32.mxu0 0.0
    %154 = vmatmul.mubr.f32.gmra.mrb[0].mxu0 %v60
    %v155 = vpop.f32.mrb[0].mxu0
    %v156 = vadd.f32 %v37, %v155
    %v157 = vpop.f32.mrb[0].mxu0
    %v158 = vadd.f32 %v37, %v157
    %159 = vmatprep.mubr.f32.mxu0 0.0
    %160 = vmatmul.mubr.f32.gmra.mrb[0].mxu0 %v62
    %v161 = vpop.f32.mrb[0].mxu0
    %v162 = vadd.f32 %v42, %v161
    %v163 = vpop.f32.mrb[0].mxu0
    %v164 = vadd.f32 %v42, %v163
    %165 = vmatprep.mubr.f32.mxu0 0.0
    %166 = vmatmul.mubr.f32.gmra.mrb[0].mxu0 %v64
    %v167 = vpop.f32.mrb[0].mxu0
    %v168 = vadd.f32 %v47, %v167
    %v169 = vpop.f32.mrb[0].mxu0
    %v170 = vadd.f32 %v47, %v169
    %171 = vdwg.mxu0
    %172 = vmatprep.subr.mxu0 %v73
    %173 = vmatpush1.msra.mxu0 %v71
    %174 = vmatprep.subr.mxu0 0.0
    %175 = vmatpush1.msra.mxu0 0.0
    %176 = vmatprep.subr.mxu0 0.0
    %177 = vmatpush1.msra.mxu0 0.0
    %178 = vmatprep.subr.mxu0 0.0
    %179 = vmatpush1.msra.mxu0 0.0
    %180 = vmatprep.subr.mxu0 0.0
    %181 = vmatpush1.msra.mxu0 0.0
    %182 = vmatprep.subr.mxu0 0.0
    %183 = vmatpush1.msra.mxu0 0.0
    %184 = vmatprep.subr.mxu0 0.0
    %185 = vmatpush1.msra.mxu0 0.0
    %186 = vmatprep.subr.mxu0 0.0
    %187 = vmatpush1.msra.mxu0 0.0
    %188 = vmatprep.subr.mxu0 0.0
    %189 = vmatpush1.msra.mxu0 0.0
    %190 = vmatprep.subr.mxu0 0.0
    %191 = vmatpush1.msra.mxu0 0.0
    %192 = vmatprep.subr.mxu0 0.0
    %193 = vmatpush1.msra.mxu0 0.0
    %194 = vmatprep.subr.mxu0 0.0
    %195 = vmatpush1.msra.mxu0 0.0
    %196 = vmatprep.subr.mxu0 0.0
    %197 = vmatpush1.msra.mxu0 0.0
    %198 = vmatprep.subr.mxu0 0.0
    %199 = vmatpush1.msra.mxu0 0.0
    %200 = vmatprep.subr.mxu0 0.0
    %201 = vmatpush1.msra.mxu0 0.0
    %202 = vmatprep.subr.mxu0 0.0
    %203 = vmatpush1.msra.mxu0 0.0
    %204 = vmatprep.subr.mxu0 0.0
    %205 = vmatpush1.msra.mxu0 0.0
    %206 = vmatprep.subr.mxu0 0.0
    %207 = vmatpush1.msra.mxu0 0.0
    %208 = vmatprep.subr.mxu0 0.0
    %209 = vmatpush1.msra.mxu0 0.0
    %210 = vmatprep.subr.mxu0 0.0
    %211 = vmatpush1.msra.mxu0 0.0
    %212 = vmatprep.subr.mxu0 0.0
    %213 = vmatpush1.msra.mxu0 0.0
    %214 = vmatprep.subr.mxu0 0.0
    %215 = vmatpush1.msra.mxu0 0.0
    %216 = vmatprep.subr.mxu0 0.0
    %217 = vmatpush1.msra.mxu0 0.0
    %218 = vmatprep.subr.mxu0 0.0
    %219 = vmatpush1.msra.mxu0 0.0
    %220 = vmatprep.subr.mxu0 0.0
    %221 = vmatpush1.msra.mxu0 0.0
    %222 = vmatprep.subr.mxu0 0.0
    %223 = vmatpush1.msra.mxu0 0.0
    %224 = vmatprep.subr.mxu0 0.0
    %225 = vmatpush1.msra.mxu0 0.0
    %226 = vmatprep.subr.mxu0 0.0
    %227 = vmatpush1.msra.mxu0 0.0
    %228 = vmatprep.subr.mxu0 0.0
    %229 = vmatpush1.msra.mxu0 0.0
    %230 = vmatprep.subr.mxu0 0.0
    %231 = vmatpush1.msra.mxu0 0.0
    %232 = vmatprep.subr.mxu0 0.0
    %233 = vmatpush1.msra.mxu0 0.0
    %234 = vmatprep.subr.mxu0 0.0
    %235 = vmatpush1.msra.mxu0 0.0
    %236 = vmatprep.mubr.f32.mxu0 0.0
    %237 = vmatmul.mubr.f32.gmra.mrb[0].mxu0 %v58
    %v238 = vpop.f32.mrb[0].mxu0
    %v239 = vadd.f32 %v32, %v238
    %v240 = vpop.f32.mrb[0].mxu0
    %v241 = vadd.f32 %v32, %v240
    %242 = vmatprep.mubr.f32.mxu0 0.0
    %243 = vmatmul.mubr.f32.gmra.mrb[0].mxu0 %v60
    %v244 = vpop.f32.mrb[0].mxu0
    %v245 = vadd.f32 %v37, %v244
    %v246 = vpop.f32.mrb[0].mxu0
    %v247 = vadd.f32 %v37, %v246
    %248 = vmatprep.mubr.f32.mxu0 0.0
    %249 = vmatmul.mubr.f32.gmra.mrb[0].mxu0 %v62
    %v250 = vpop.f32.mrb[0].mxu0
    %v251 = vadd.f32 %v42, %v250
    %v252 = vpop.f32.mrb[0].mxu0
    %v253 = vadd.f32 %v42, %v252
    %254 = vmatprep.mubr.f32.mxu0 0.0
    %255 = vmatmul.mubr.f32.gmra.mrb[0].mxu0 %v64
    %v256 = vpop.f32.mrb[0].mxu0
    %v257 = vadd.f32 %v47, %v256
    %v258 = vpop.f32.mrb[0].mxu0
    %v259 = vadd.f32 %v47, %v258
    %260 = vdwg.mxu0
    %261 = vmatprep.subr.mxu0 %v77
    %262 = vmatpush1.msra.mxu0 %v75
    %263 = vmatprep.subr.mxu0 0.0
    %264 = vmatpush1.msra.mxu0 0.0
    %265 = vmatprep.subr.mxu0 0.0
    %266 = vmatpush1.msra.mxu0 0.0
    %267 = vmatprep.subr.mxu0 0.0
    %268 = vmatpush1.msra.mxu0 0.0
    %269 = vmatprep.subr.mxu0 0.0
    %270 = vmatpush1.msra.mxu0 0.0
    %271 = vmatprep.subr.mxu0 0.0
    %272 = vmatpush1.msra.mxu0 0.0
    %273 = vmatprep.subr.mxu0 0.0
    %274 = vmatpush1.msra.mxu0 0.0
    %275 = vmatprep.subr.mxu0 0.0
    %276 = vmatpush1.msra.mxu0 0.0
    %277 = vmatprep.subr.mxu0 0.0
    %278 = vmatpush1.msra.mxu0 0.0
    %279 = vmatprep.subr.mxu0 0.0
    %280 = vmatpush1.msra.mxu0 0.0
    %281 = vmatprep.subr.mxu0 0.0
    %282 = vmatpush1.msra.mxu0 0.0
    %283 = vmatprep.subr.mxu0 0.0
    %284 = vmatpush1.msra.mxu0 0.0
    %285 = vmatprep.subr.mxu0 0.0
    %286 = vmatpush1.msra.mxu0 0.0
    %287 = vmatprep.subr.mxu0 0.0
    %288 = vmatpush1.msra.mxu0 0.0
    %289 = vmatprep.subr.mxu0 0.0
    %290 = vmatpush1.msra.mxu0 0.0
    %291 = vmatprep.subr.mxu0 0.0
    %292 = vmatpush1.msra.mxu0 0.0
    %293 = vmatprep.subr.mxu0 0.0
    %294 = vmatpush1.msra.mxu0 0.0
    %295 = vmatprep.subr.mxu0 0.0
    %296 = vmatpush1.msra.mxu0 0.0
    %297 = vmatprep.subr.mxu0 0.0
    %298 = vmatpush1.msra.mxu0 0.0
    %299 = vmatprep.subr.mxu0 0.0
    %300 = vmatpush1.msra.mxu0 0.0
    %301 = vmatprep.subr.mxu0 0.0
    %302 = vmatpush1.msra.mxu0 0.0
    %303 = vmatprep.subr.mxu0 0.0
    %304 = vmatpush1.msra.mxu0 0.0
    %305 = vmatprep.subr.mxu0 0.0
    %306 = vmatpush1.msra.mxu0 0.0
    %307 = vmatprep.subr.mxu0 0.0
    %308 = vmatpush1.msra.mxu0 0.0
    %309 = vmatprep.subr.mxu0 0.0
    %310 = vmatpush1.msra.mxu0 0.0
    %311 = vmatprep.subr.mxu0 0.0
    %312 = vmatpush1.msra.mxu0 0.0
    %313 = vmatprep.subr.mxu0 0.0
    %314 = vmatpush1.msra.mxu0 0.0
    %315 = vmatprep.subr.mxu0 0.0
    %316 = vmatpush1.msra.mxu0 0.0
    %317 = vmatprep.subr.mxu0 0.0
    %318 = vmatpush1.msra.mxu0 0.0
    %319 = vmatprep.subr.mxu0 0.0
    %320 = vmatpush1.msra.mxu0 0.0
    %321 = vmatprep.subr.mxu0 0.0
    %322 = vmatpush1.msra.mxu0 0.0
    %323 = vmatprep.subr.mxu0 0.0
    %324 = vmatpush1.msra.mxu0 0.0
    %325 = vmatprep.mubr.f32.mxu0 0.0
    %326 = vmatmul.mubr.f32.gmra.mrb[0].mxu0 %v58
    %v327 = vpop.f32.mrb[0].mxu0
    %v328 = vadd.f32 %v32, %v327
    %v329 = vpop.f32.mrb[0].mxu0
    %v330 = vadd.f32 %v32, %v329
    %331 = vmatprep.mubr.f32.mxu0 0.0
    %332 = vmatmul.mubr.f32.gmra.mrb[0].mxu0 %v60
    %v333 = vpop.f32.mrb[0].mxu0
    %v334 = vadd.f32 %v37, %v333
    %v335 = vpop.f32.mrb[0].mxu0
    %v336 = vadd.f32 %v37, %v335
    %337 = vmatprep.mubr.f32.mxu0 0.0
    %338 = vmatmul.mubr.f32.gmra.mrb[0].mxu0 %v62
    %v339 = vpop.f32.mrb[0].mxu0
    %v340 = vadd.f32 %v42, %v339
    %v341 = vpop.f32.mrb[0].mxu0
    %v342 = vadd.f32 %v42, %v341
    %343 = vmatprep.mubr.f32.mxu0 0.0
    %344 = vmatmul.mubr.f32.gmra.mrb[0].mxu0 %v64
    %v345 = vpop.f32.mrb[0].mxu0
    %v346 = vadd.f32 %v47, %v345
    %v347 = vpop.f32.mrb[0].mxu0
    %v348 = vadd.f32 %v47, %v347
    %349 = vdwg.mxu0
    %350 = vmatprep.subr.mxu0 %v81
    %351 = vmatpush1.msra.mxu0 %v79
    %352 = vmatprep.subr.mxu0 0.0
    %353 = vmatpush1.msra.mxu0 0.0
    %354 = vmatprep.subr.mxu0 0.0
    %355 = vmatpush1.msra.mxu0 0.0
    %356 = vmatprep.subr.mxu0 0.0
    %357 = vmatpush1.msra.mxu0 0.0
    %358 = vmatprep.subr.mxu0 0.0
    %359 = vmatpush1.msra.mxu0 0.0
    %360 = vmatprep.subr.mxu0 0.0
    %361 = vmatpush1.msra.mxu0 0.0
    %362 = vmatprep.subr.mxu0 0.0
    %363 = vmatpush1.msra.mxu0 0.0
    %364 = vmatprep.subr.mxu0 0.0
    %365 = vmatpush1.msra.mxu0 0.0
    %366 = vmatprep.subr.mxu0 0.0
    %367 = vmatpush1.msra.mxu0 0.0
    %368 = vmatprep.subr.mxu0 0.0
    %369 = vmatpush1.msra.mxu0 0.0
    %370 = vmatprep.subr.mxu0 0.0
    %371 = vmatpush1.msra.mxu0 0.0
    %372 = vmatprep.subr.mxu0 0.0
    %373 = vmatpush1.msra.mxu0 0.0
    %374 = vmatprep.subr.mxu0 0.0
    %375 = vmatpush1.msra.mxu0 0.0
    %376 = vmatprep.subr.mxu0 0.0
    %377 = vmatpush1.msra.mxu0 0.0
    %378 = vmatprep.subr.mxu0 0.0
    %379 = vmatpush1.msra.mxu0 0.0
    %380 = vmatprep.subr.mxu0 0.0
    %381 = vmatpush1.msra.mxu0 0.0
    %382 = vmatprep.subr.mxu0 0.0
    %383 = vmatpush1.msra.mxu0 0.0
    %384 = vmatprep.subr.mxu0 0.0
    %385 = vmatpush1.msra.mxu0 0.0
    %386 = vmatprep.subr.mxu0 0.0
    %387 = vmatpush1.msra.mxu0 0.0
    %388 = vmatprep.subr.mxu0 0.0
    %389 = vmatpush1.msra.mxu0 0.0
    %390 = vmatprep.subr.mxu0 0.0
    %391 = vmatpush1.msra.mxu0 0.0
    %392 = vmatprep.subr.mxu0 0.0
    %393 = vmatpush1.msra.mxu0 0.0
    %394 = vmatprep.subr.mxu0 0.0
    %395 = vmatpush1.msra.mxu0 0.0
    %396 = vmatprep.subr.mxu0 0.0
    %397 = vmatpush1.msra.mxu0 0.0
    %398 = vmatprep.subr.mxu0 0.0
    %399 = vmatpush1.msra.mxu0 0.0
    %400 = vmatprep.subr.mxu0 0.0
    %401 = vmatpush1.msra.mxu0 0.0
    %402 = vmatprep.subr.mxu0 0.0
    %403 = vmatpush1.msra.mxu0 0.0
    %404 = vmatprep.subr.mxu0 0.0
    %405 = vmatpush1.msra.mxu0 0.0
    %406 = vmatprep.subr.mxu0 0.0
    %407 = vmatpush1.msra.mxu0 0.0
    %408 = vmatprep.subr.mxu0 0.0
    %409 = vmatpush1.msra.mxu0 0.0
    %410 = vmatprep.subr.mxu0 0.0
    %411 = vmatpush1.msra.mxu0 0.0
    %412 = vmatprep.subr.mxu0 0.0
    %413 = vmatpush1.msra.mxu0 0.0
    %414 = vmatprep.mubr.f32.mxu0 0.0
    %415 = vmatmul.mubr.f32.gmra.mrb[0].mxu0 %v58
    %v416 = vpop.f32.mrb[0].mxu0
    %v417 = vadd.f32 %v32, %v416
    %v418 = vpop.f32.mrb[0].mxu0
    %v419 = vadd.f32 %v32, %v418
    %420 = vmatprep.mubr.f32.mxu0 0.0
    %421 = vmatmul.mubr.f32.gmra.mrb[0].mxu0 %v60
    %v422 = vpop.f32.mrb[0].mxu0
    %v423 = vadd.f32 %v37, %v422
    %v424 = vpop.f32.mrb[0].mxu0
    %v425 = vadd.f32 %v37, %v424
    %426 = vmatprep.mubr.f32.mxu0 0.0
    %427 = vmatmul.mubr.f32.gmra.mrb[0].mxu0 %v62
    %v428 = vpop.f32.mrb[0].mxu0
    %v429 = vadd.f32 %v42, %v428
    %v430 = vpop.f32.mrb[0].mxu0
    %v431 = vadd.f32 %v42, %v430
    %432 = vmatprep.mubr.f32.mxu0 0.0
    %433 = vmatmul.mubr.f32.gmra.mrb[0].mxu0 %v64
    %v434 = vpop.f32.mrb[0].mxu0
    %v435 = vadd.f32 %v47, %v434
    %v436 = vpop.f32.mrb[0].mxu0
    %v437 = vadd.f32 %v47, %v436
    %438 = vdwg.mxu0
    %v439 = vtanh.pop %v150
    %v440 = vtanh.pop %v152
    %v441 = vtanh.pop %v239
    %v442 = vtanh.pop %v241
    %v443 = vtanh.pop %v328
    %v444 = vtanh.pop %v330
    %v445 = vtanh.pop %v417
    %v446 = vtanh.pop %v419
    %v447 = vtanh.pop %v156
    %v448 = vtanh.pop %v158
    %v449 = vtanh.pop %v245
    %v450 = vtanh.pop %v247
    %v451 = vtanh.pop %v334
    %v452 = vtanh.pop %v336
    %v453 = vtanh.pop %v423
    %v454 = vtanh.pop %v425
    %v455 = vtanh.pop %v162
    %v456 = vtanh.pop %v164
    %v457 = vtanh.pop %v251
    %v458 = vtanh.pop %v253
    %v459 = vtanh.pop %v340
    %v460 = vtanh.pop %v342
    %v461 = vtanh.pop %v429
    %v462 = vtanh.pop %v431
    %v463 = vtanh.pop %v168
    %v464 = vtanh.pop %v170
    %v465 = vtanh.pop %v257
    %v466 = vtanh.pop %v259
    %v467 = vtanh.pop %v346
    %v468 = vtanh.pop %v348
    %v469 = vtanh.pop %v435
    %v470 = vtanh.pop %v437
    %472 = vset.pattern.permute.xlu0 31
    %473 = vperm.xlu0 %472, %v20
    %v474 = vpop.permute.xlu0 %473
    %477 = vset.pattern.permute.xlu0 31
    %478 = vperm.xlu0 %477, %v21
    %v479 = vpop.permute.xlu0 %478
    %482 = vset.pattern.permute.xlu0 31
    %483 = vperm.xlu0 %482, %v22
    %v484 = vpop.permute.xlu0 %483
    %487 = vset.pattern.permute.xlu0 31
    %488 = vperm.xlu0 %487, %v23
    %v489 = vpop.permute.xlu0 %488
    %vm491 = vcmask 244736
    %v492 = vsel %vm491, %v20, 0
    %v494 = vsel %vm491, %v21, 0
    %v496 = vsel %vm491, %v22, 0
    %v498 = vsel %vm491, %v23, 0
    %vm500 = vcmask 1045504
    %v502 = vsel %vm500, %v463, 0
    %v505 = vsel %vm500, %v464, 0
    %v508 = vsel %vm500, %v465, 0
    %v511 = vsel %vm500, %v466, 0
    %v514 = vsel %vm500, %v467, 0
    %v517 = vsel %vm500, %v468, 0
    %v520 = vsel %vm500, %v469, 0
    %v523 = vsel %vm500, %v470, 0
    %525 = vmatprep.subr.mxu0 %v440
    %526 = vmatpush1.msra.mxu0 %v439
    %527 = vmatprep.subr.mxu0 %v448
    %528 = vmatpush1.msra.mxu0 %v447
    %529 = vmatprep.subr.mxu0 %v456
    %530 = vmatpush1.msra.mxu0 %v455
    %531 = vmatprep.subr.mxu0 %v505
    %532 = vmatpush1.msra.mxu0 %v502
    %533 = vmatprep.subr.mxu0 0.0
    %534 = vmatpush1.msra.mxu0 0.0
    %535 = vmatprep.subr.mxu0 0.0
    %536 = vmatpush1.msra.mxu0 0.0
    %537 = vmatprep.subr.mxu0 0.0
    %538 = vmatpush1.msra.mxu0 0.0
    %539 = vmatprep.subr.mxu0 0.0
    %540 = vmatpush1.msra.mxu0 0.0
    %541 = vmatprep.subr.mxu0 0.0
    %542 = vmatpush1.msra.mxu0 0.0
    %543 = vmatprep.subr.mxu0 0.0
    %544 = vmatpush1.msra.mxu0 0.0
    %545 = vmatprep.subr.mxu0 0.0
    %546 = vmatpush1.msra.mxu0 0.0
    %547 = vmatprep.subr.mxu0 0.0
    %548 = vmatpush1.msra.mxu0 0.0
    %549 = vmatprep.subr.mxu0 0.0
    %550 = vmatpush1.msra.mxu0 0.0
    %551 = vmatprep.subr.mxu0 0.0
    %552 = vmatpush1.msra.mxu0 0.0
    %553 = vmatprep.subr.mxu0 0.0
    %554 = vmatpush1.msra.mxu0 0.0
    %555 = vmatprep.subr.mxu0 0.0
    %556 = vmatpush1.msra.mxu0 0.0
    %557 = vmatprep.subr.mxu0 0.0
    %558 = vmatpush1.msra.mxu0 0.0
    %559 = vmatprep.subr.mxu0 0.0
    %560 = vmatpush1.msra.mxu0 0.0
    %561 = vmatprep.subr.mxu0 0.0
    %562 = vmatpush1.msra.mxu0 0.0
    %563 = vmatprep.subr.mxu0 0.0
    %564 = vmatpush1.msra.mxu0 0.0
    %565 = vmatprep.subr.mxu0 0.0
    %566 = vmatpush1.msra.mxu0 0.0
    %567 = vmatprep.subr.mxu0 0.0
    %568 = vmatpush1.msra.mxu0 0.0
    %569 = vmatprep.subr.mxu0 0.0
    %570 = vmatpush1.msra.mxu0 0.0
    %571 = vmatprep.subr.mxu0 0.0
    %572 = vmatpush1.msra.mxu0 0.0
    %573 = vmatprep.subr.mxu0 0.0
    %574 = vmatpush1.msra.mxu0 0.0
    %575 = vmatprep.subr.mxu0 0.0
    %576 = vmatpush1.msra.mxu0 0.0
    %577 = vmatprep.subr.mxu0 0.0
    %578 = vmatpush1.msra.mxu0 0.0
    %579 = vmatprep.subr.mxu0 0.0
    %580 = vmatpush1.msra.mxu0 0.0
    %581 = vmatprep.subr.mxu0 0.0
    %582 = vmatpush1.msra.mxu0 0.0
    %583 = vmatprep.subr.mxu0 0.0
    %584 = vmatpush1.msra.mxu0 0.0
    %585 = vmatprep.subr.mxu0 0.0
    %586 = vmatpush1.msra.mxu0 0.0
    %587 = vmatprep.subr.mxu0 0.0
    %588 = vmatpush1.msra.mxu0 0.0
    %589 = vmatprep.mubr.f32.mxu0 0.0
    %590 = vmatmul.mubr.f32.gmra.mrb[0].mxu0 %v492
    %v591 = vpop.f32.mrb[0].mxu0
    %v592 = vadd.f32 %v474, %v591
    %v593 = vpop.f32.mrb[0].mxu0
    %v594 = vadd.f32 %v474, %v593
    %595 = vmatprep.mubr.f32.mxu0 0.0
    %596 = vmatmul.mubr.f32.gmra.mrb[0].mxu0 %v494
    %v597 = vpop.f32.mrb[0].mxu0
    %v598 = vadd.f32 %v479, %v597
    %v599 = vpop.f32.mrb[0].mxu0
    %v600 = vadd.f32 %v479, %v599
    %601 = vmatprep.mubr.f32.mxu0 0.0
    %602 = vmatmul.mubr.f32.gmra.mrb[0].mxu0 %v496
    %v603 = vpop.f32.mrb[0].mxu0
    %v604 = vadd.f32 %v484, %v603
    %v605 = vpop.f32.mrb[0].mxu0
    %v606 = vadd.f32 %v484, %v605
    %607 = vmatprep.mubr.f32.mxu0 0.0
    %608 = vmatmul.mubr.f32.gmra.mrb[0].mxu0 %v498
    %v609 = vpop.f32.mrb[0].mxu0
    %v610 = vadd.f32 %v489, %v609
    %v611 = vpop.f32.mrb[0].mxu0
    %v612 = vadd.f32 %v489, %v611
    %613 = vdwg.mxu0
    %614 = vmatprep.subr.mxu0 %v442
    %615 = vmatpush1.msra.mxu0 %v441
    %616 = vmatprep.subr.mxu0 %v450
    %617 = vmatpush1.msra.mxu0 %v449
    %618 = vmatprep.subr.mxu0 %v458
    %619 = vmatpush1.msra.mxu0 %v457
    %620 = vmatprep.subr.mxu0 %v511
    %621 = vmatpush1.msra.mxu0 %v508
    %622 = vmatprep.subr.mxu0 0.0
    %623 = vmatpush1.msra.mxu0 0.0
    %624 = vmatprep.subr.mxu0 0.0
    %625 = vmatpush1.msra.mxu0 0.0
    %626 = vmatprep.subr.mxu0 0.0
    %627 = vmatpush1.msra.mxu0 0.0
    %628 = vmatprep.subr.mxu0 0.0
    %629 = vmatpush1.msra.mxu0 0.0
    %630 = vmatprep.subr.mxu0 0.0
    %631 = vmatpush1.msra.mxu0 0.0
    %632 = vmatprep.subr.mxu0 0.0
    %633 = vmatpush1.msra.mxu0 0.0
    %634 = vmatprep.subr.mxu0 0.0
    %635 = vmatpush1.msra.mxu0 0.0
    %636 = vmatprep.subr.mxu0 0.0
    %637 = vmatpush1.msra.mxu0 0.0
    %638 = vmatprep.subr.mxu0 0.0
    %639 = vmatpush1.msra.mxu0 0.0
    %640 = vmatprep.subr.mxu0 0.0
    %641 = vmatpush1.msra.mxu0 0.0
    %642 = vmatprep.subr.mxu0 0.0
    %643 = vmatpush1.msra.mxu0 0.0
    %644 = vmatprep.subr.mxu0 0.0
    %645 = vmatpush1.msra.mxu0 0.0
    %646 = vmatprep.subr.mxu0 0.0
    %647 = vmatpush1.msra.mxu0 0.0
    %648 = vmatprep.subr.mxu0 0.0
    %649 = vmatpush1.msra.mxu0 0.0
    %650 = vmatprep.subr.mxu0 0.0
    %651 = vmatpush1.msra.mxu0 0.0
    %652 = vmatprep.subr.mxu0 0.0
    %653 = vmatpush1.msra.mxu0 0.0
    %654 = vmatprep.subr.mxu0 0.0
    %655 = vmatpush1.msra.mxu0 0.0
    %656 = vmatprep.subr.mxu0 0.0
    %657 = vmatpush1.msra.mxu0 0.0
    %658 = vmatprep.subr.mxu0 0.0
    %659 = vmatpush1.msra.mxu0 0.0
    %660 = vmatprep.subr.mxu0 0.0
    %661 = vmatpush1.msra.mxu0 0.0
    %662 = vmatprep.subr.mxu0 0.0
    %663 = vmatpush1.msra.mxu0 0.0
    %664 = vmatprep.subr.mxu0 0.0
    %665 = vmatpush1.msra.mxu0 0.0
    %666 = vmatprep.subr.mxu0 0.0
    %667 = vmatpush1.msra.mxu0 0.0
    %668 = vmatprep.subr.mxu0 0.0
    %669 = vmatpush1.msra.mxu0 0.0
    %670 = vmatprep.subr.mxu0 0.0
    %671 = vmatpush1.msra.mxu0 0.0
    %672 = vmatprep.subr.mxu0 0.0
    %673 = vmatpush1.msra.mxu0 0.0
    %674 = vmatprep.subr.mxu0 0.0
    %675 = vmatpush1.msra.mxu0 0.0
    %676 = vmatprep.subr.mxu0 0.0
    %677 = vmatpush1.msra.mxu0 0.0
    %678 = vmatprep.mubr.f32.mxu0 0.0
    %679 = vmatmul.mubr.f32.gmra.mrb[0].mxu0 %v492
    %v680 = vpop.f32.mrb[0].mxu0
    %v681 = vadd.f32 %v474, %v680
    %v682 = vpop.f32.mrb[0].mxu0
    %v683 = vadd.f32 %v474, %v682
    %684 = vmatprep.mubr.f32.mxu0 0.0
    %685 = vmatmul.mubr.f32.gmra.mrb[0].mxu0 %v494
    %v686 = vpop.f32.mrb[0].mxu0
    %v687 = vadd.f32 %v479, %v686
    %v688 = vpop.f32.mrb[0].mxu0
    %v689 = vadd.f32 %v479, %v688
    %690 = vmatprep.mubr.f32.mxu0 0.0
    %691 = vmatmul.mubr.f32.gmra.mrb[0].mxu0 %v496
    %v692 = vpop.f32.mrb[0].mxu0
    %v693 = vadd.f32 %v484, %v692
    %v694 = vpop.f32.mrb[0].mxu0
    %v695 = vadd.f32 %v484, %v694
    %696 = vmatprep.mubr.f32.mxu0 0.0
    %697 = vmatmul.mubr.f32.gmra.mrb[0].mxu0 %v498
    %v698 = vpop.f32.mrb[0].mxu0
    %v699 = vadd.f32 %v489, %v698
    %v700 = vpop.f32.mrb[0].mxu0
    %v701 = vadd.f32 %v489, %v700
    %702 = vdwg.mxu0
    %703 = vmatprep.subr.mxu0 %v444
    %704 = vmatpush1.msra.mxu0 %v443
    %705 = vmatprep.subr.mxu0 %v452
    %706 = vmatpush1.msra.mxu0 %v451
    %707 = vmatprep.subr.mxu0 %v460
    %708 = vmatpush1.msra.mxu0 %v459
    %709 = vmatprep.subr.mxu0 %v517
    %710 = vmatpush1.msra.mxu0 %v514
    %711 = vmatprep.subr.mxu0 0.0
    %712 = vmatpush1.msra.mxu0 0.0
    %713 = vmatprep.subr.mxu0 0.0
    %714 = vmatpush1.msra.mxu0 0.0
    %715 = vmatprep.subr.mxu0 0.0
    %716 = vmatpush1.msra.mxu0 0.0
    %717 = vmatprep.subr.mxu0 0.0
    %718 = vmatpush1.msra.mxu0 0.0
    %719 = vmatprep.subr.mxu0 0.0
    %720 = vmatpush1.msra.mxu0 0.0
    %721 = vmatprep.subr.mxu0 0.0
    %722 = vmatpush1.msra.mxu0 0.0
    %723 = vmatprep.subr.mxu0 0.0
    %724 = vmatpush1.msra.mxu0 0.0
    %725 = vmatprep.subr.mxu0 0.0
    %726 = vmatpush1.msra.mxu0 0.0
    %727 = vmatprep.subr.mxu0 0.0
    %728 = vmatpush1.msra.mxu0 0.0
    %729 = vmatprep.subr.mxu0 0.0
    %730 = vmatpush1.msra.mxu0 0.0
    %731 = vmatprep.subr.mxu0 0.0
    %732 = vmatpush1.msra.mxu0 0.0
    %733 = vmatprep.subr.mxu0 0.0
    %734 = vmatpush1.msra.mxu0 0.0
    %735 = vmatprep.subr.mxu0 0.0
    %736 = vmatpush1.msra.mxu0 0.0
    %737 = vmatprep.subr.mxu0 0.0
    %738 = vmatpush1.msra.mxu0 0.0
    %739 = vmatprep.subr.mxu0 0.0
    %740 = vmatpush1.msra.mxu0 0.0
    %741 = vmatprep.subr.mxu0 0.0
    %742 = vmatpush1.msra.mxu0 0.0
    %743 = vmatprep.subr.mxu0 0.0
    %744 = vmatpush1.msra.mxu0 0.0
    %745 = vmatprep.subr.mxu0 0.0
    %746 = vmatpush1.msra.mxu0 0.0
    %747 = vmatprep.subr.mxu0 0.0
    %748 = vmatpush1.msra.mxu0 0.0
    %749 = vmatprep.subr.mxu0 0.0
    %750 = vmatpush1.msra.mxu0 0.0
    %751 = vmatprep.subr.mxu0 0.0
    %752 = vmatpush1.msra.mxu0 0.0
    %753 = vmatprep.subr.mxu0 0.0
    %754 = vmatpush1.msra.mxu0 0.0
    %755 = vmatprep.subr.mxu0 0.0
    %756 = vmatpush1.msra.mxu0 0.0
    %757 = vmatprep.subr.mxu0 0.0
    %758 = vmatpush1.msra.mxu0 0.0
    %759 = vmatprep.subr.mxu0 0.0
    %760 = vmatpush1.msra.mxu0 0.0
    %761 = vmatprep.subr.mxu0 0.0
    %762 = vmatpush1.msra.mxu0 0.0
    %763 = vmatprep.subr.mxu0 0.0
    %764 = vmatpush1.msra.mxu0 0.0
    %765 = vmatprep.subr.mxu0 0.0
    %766 = vmatpush1.msra.mxu0 0.0
    %767 = vmatprep.mubr.f32.mxu0 0.0
    %768 = vmatmul.mubr.f32.gmra.mrb[0].mxu0 %v492
    %v769 = vpop.f32.mrb[0].mxu0
    %v770 = vadd.f32 %v474, %v769
    %v771 = vpop.f32.mrb[0].mxu0
    %v772 = vadd.f32 %v474, %v771
    %773 = vmatprep.mubr.f32.mxu0 0.0
    %774 = vmatmul.mubr.f32.gmra.mrb[0].mxu0 %v494
    %v775 = vpop.f32.mrb[0].mxu0
    %v776 = vadd.f32 %v479, %v775
    %v777 = vpop.f32.mrb[0].mxu0
    %v778 = vadd.f32 %v479, %v777
    %779 = vmatprep.mubr.f32.mxu0 0.0
    %780 = vmatmul.mubr.f32.gmra.mrb[0].mxu0 %v496
    %v781 = vpop.f32.mrb[0].mxu0
    %v782 = vadd.f32 %v484, %v781
    %v783 = vpop.f32.mrb[0].mxu0
    %v784 = vadd.f32 %v484, %v783
    %785 = vmatprep.mubr.f32.mxu0 0.0
    %786 = vmatmul.mubr.f32.gmra.mrb[0].mxu0 %v498
    %v787 = vpop.f32.mrb[0].mxu0
    %v788 = vadd.f32 %v489, %v787
    %v789 = vpop.f32.mrb[0].mxu0
    %v790 = vadd.f32 %v489, %v789
    %791 = vdwg.mxu0
    %792 = vmatprep.subr.mxu0 %v446
    %793 = vmatpush1.msra.mxu0 %v445
    %794 = vmatprep.subr.mxu0 %v454
    %795 = vmatpush1.msra.mxu0 %v453
    %796 = vmatprep.subr.mxu0 %v462
    %797 = vmatpush1.msra.mxu0 %v461
    %798 = vmatprep.subr.mxu0 %v523
    %799 = vmatpush1.msra.mxu0 %v520
    %800 = vmatprep.subr.mxu0 0.0
    %801 = vmatpush1.msra.mxu0 0.0
    %802 = vmatprep.subr.mxu0 0.0
    %803 = vmatpush1.msra.mxu0 0.0
    %804 = vmatprep.subr.mxu0 0.0
    %805 = vmatpush1.msra.mxu0 0.0
    %806 = vmatprep.subr.mxu0 0.0
    %807 = vmatpush1.msra.mxu0 0.0
    %808 = vmatprep.subr.mxu0 0.0
    %809 = vmatpush1.msra.mxu0 0.0
    %810 = vmatprep.subr.mxu0 0.0
    %811 = vmatpush1.msra.mxu0 0.0
    %812 = vmatprep.subr.mxu0 0.0
    %813 = vmatpush1.msra.mxu0 0.0
    %814 = vmatprep.subr.mxu0 0.0
    %815 = vmatpush1.msra.mxu0 0.0
    %816 = vmatprep.subr.mxu0 0.0
    %817 = vmatpush1.msra.mxu0 0.0
    %818 = vmatprep.subr.mxu0 0.0
    %819 = vmatpush1.msra.mxu0 0.0
    %820 = vmatprep.subr.mxu0 0.0
    %821 = vmatpush1.msra.mxu0 0.0
    %822 = vmatprep.subr.mxu0 0.0
    %823 = vmatpush1.msra.mxu0 0.0
    %824 = vmatprep.subr.mxu0 0.0
    %825 = vmatpush1.msra.mxu0 0.0
    %826 = vmatprep.subr.mxu0 0.0
    %827 = vmatpush1.msra.mxu0 0.0
    %828 = vmatprep.subr.mxu0 0.0
    %829 = vmatpush1.msra.mxu0 0.0
    %830 = vmatprep.subr.mxu0 0.0
    %831 = vmatpush1.msra.mxu0 0.0
    %832 = vmatprep.subr.mxu0 0.0
    %833 = vmatpush1.msra.mxu0 0.0
    %834 = vmatprep.subr.mxu0 0.0
    %835 = vmatpush1.msra.mxu0 0.0
    %836 = vmatprep.subr.mxu0 0.0
    %837 = vmatpush1.msra.mxu0 0.0
    %838 = vmatprep.subr.mxu0 0.0
    %839 = vmatpush1.msra.mxu0 0.0
    %840 = vmatprep.subr.mxu0 0.0
    %841 = vmatpush1.msra.mxu0 0.0
    %842 = vmatprep.subr.mxu0 0.0
    %843 = vmatpush1.msra.mxu0 0.0
    %844 = vmatprep.subr.mxu0 0.0
    %845 = vmatpush1.msra.mxu0 0.0
    %846 = vmatprep.subr.mxu0 0.0
    %847 = vmatpush1.msra.mxu0 0.0
    %848 = vmatprep.subr.mxu0 0.0
    %849 = vmatpush1.msra.mxu0 0.0
    %850 = vmatprep.subr.mxu0 0.0
    %851 = vmatpush1.msra.mxu0 0.0
    %852 = vmatprep.subr.mxu0 0.0
    %853 = vmatpush1.msra.mxu0 0.0
    %854 = vmatprep.subr.mxu0 0.0
    %855 = vmatpush1.msra.mxu0 0.0
    %856 = vmatprep.mubr.f32.mxu0 0.0
    %857 = vmatmul.mubr.f32.gmra.mrb[0].mxu0 %v492
    %v858 = vpop.f32.mrb[0].mxu0
    %v859 = vadd.f32 %v474, %v858
    %v860 = vpop.f32.mrb[0].mxu0
    %v861 = vadd.f32 %v474, %v860
    %862 = vmatprep.mubr.f32.mxu0 0.0
    %863 = vmatmul.mubr.f32.gmra.mrb[0].mxu0 %v494
    %v864 = vpop.f32.mrb[0].mxu0
    %v865 = vadd.f32 %v479, %v864
    %v866 = vpop.f32.mrb[0].mxu0
    %v867 = vadd.f32 %v479, %v866
    %868 = vmatprep.mubr.f32.mxu0 0.0
    %869 = vmatmul.mubr.f32.gmra.mrb[0].mxu0 %v496
    %v870 = vpop.f32.mrb[0].mxu0
    %v871 = vadd.f32 %v484, %v870
    %v872 = vpop.f32.mrb[0].mxu0
    %v873 = vadd.f32 %v484, %v872
    %874 = vmatprep.mubr.f32.mxu0 0.0
    %875 = vmatmul.mubr.f32.gmra.mrb[0].mxu0 %v498
    %v876 = vpop.f32.mrb[0].mxu0
    %v877 = vadd.f32 %v489, %v876
    %v878 = vpop.f32.mrb[0].mxu0
    %v879 = vadd.f32 %v489, %v878
    %880 = vdwg.mxu0
    %v881 = vtanh.pop %v592
    %v882 = vtanh.pop %v594
    %v883 = vtanh.pop %v681
    %v884 = vtanh.pop %v683
    %v885 = vtanh.pop %v770
    %v886 = vtanh.pop %v772
    %v887 = vtanh.pop %v859
    %v888 = vtanh.pop %v861
    %v889 = vtanh.pop %v598
    %v890 = vtanh.pop %v600
    %v891 = vtanh.pop %v687
    %v892 = vtanh.pop %v689
    %v893 = vtanh.pop %v776
    %v894 = vtanh.pop %v778
    %v895 = vtanh.pop %v865
    %v896 = vtanh.pop %v867
    %v897 = vtanh.pop %v604
    %v898 = vtanh.pop %v606
    %v899 = vtanh.pop %v693
    %v900 = vtanh.pop %v695
    %v901 = vtanh.pop %v782
    %v902 = vtanh.pop %v784
    %v903 = vtanh.pop %v871
    %v904 = vtanh.pop %v873
    %v905 = vtanh.pop %v610
    %v906 = vtanh.pop %v612
    %v907 = vtanh.pop %v699
    %v908 = vtanh.pop %v701
    %v909 = vtanh.pop %v788
    %v910 = vtanh.pop %v790
    %v911 = vtanh.pop %v877
    %v912 = vtanh.pop %v879
    %914 = vset.pattern.permute.xlu0 31
    %915 = vperm.xlu0 %914, %v24
    %v916 = vpop.permute.xlu0 %915
    %919 = vset.pattern.permute.xlu0 31
    %920 = vperm.xlu0 %919, %v25
    %v921 = vpop.permute.xlu0 %920
    %924 = vset.pattern.permute.xlu0 31
    %925 = vperm.xlu0 %924, %v26
    %v926 = vpop.permute.xlu0 %925
    %929 = vset.pattern.permute.xlu0 31
    %930 = vperm.xlu0 %929, %v27
    %v931 = vpop.permute.xlu0 %930
    %934 = vset.pattern.permute.xlu0 31
    %935 = vperm.xlu0 %934, %v28
    %v936 = vpop.permute.xlu0 %935
    %v938 = vsel %vm491, %v24, 0
    %v940 = vsel %vm491, %v25, 0
    %v942 = vsel %vm491, %v26, 0
    %v944 = vsel %vm491, %v27, 0
    %v946 = vsel %vm491, %v28, 0
    %v949 = vsel %vm500, %v905, 0
    %v952 = vsel %vm500, %v906, 0
    %v955 = vsel %vm500, %v907, 0
    %v958 = vsel %vm500, %v908, 0
    %v961 = vsel %vm500, %v909, 0
    %v964 = vsel %vm500, %v910, 0
    %v967 = vsel %vm500, %v911, 0
    %v970 = vsel %vm500, %v912, 0
    %972 = vmatprep.subr.mxu0 %v882
    %973 = vmatpush1.msra.mxu0 %v881
    %974 = vmatprep.subr.mxu0 %v890
    %975 = vmatpush1.msra.mxu0 %v889
    %976 = vmatprep.subr.mxu0 %v898
    %977 = vmatpush1.msra.mxu0 %v897
    %978 = vmatprep.subr.mxu0 %v952
    %979 = vmatpush1.msra.mxu0 %v949
    %980 = vmatprep.subr.mxu0 0.0
    %981 = vmatpush1.msra.mxu0 0.0
    %982 = vmatprep.subr.mxu0 0.0
    %983 = vmatpush1.msra.mxu0 0.0
    %984 = vmatprep.subr.mxu0 0.0
    %985 = vmatpush1.msra.mxu0 0.0
    %986 = vmatprep.subr.mxu0 0.0
    %987 = vmatpush1.msra.mxu0 0.0
    %988 = vmatprep.subr.mxu0 0.0
    %989 = vmatpush1.msra.mxu0 0.0
    %990 = vmatprep.subr.mxu0 0.0
    %991 = vmatpush1.msra.mxu0 0.0
    %992 = vmatprep.subr.mxu0 0.0
    %993 = vmatpush1.msra.mxu0 0.0
    %994 = vmatprep.subr.mxu0 0.0
    %995 = vmatpush1.msra.mxu0 0.0
    %996 = vmatprep.subr.mxu0 0.0
    %997 = vmatpush1.msra.mxu0 0.0
    %998 = vmatprep.subr.mxu0 0.0
    %999 = vmatpush1.msra.mxu0 0.0
    %1000 = vmatprep.subr.mxu0 0.0
    %1001 = vmatpush1.msra.mxu0 0.0
    %1002 = vmatprep.subr.mxu0 0.0
    %1003 = vmatpush1.msra.mxu0 0.0
    %1004 = vmatprep.subr.mxu0 0.0
    %1005 = vmatpush1.msra.mxu0 0.0
    %1006 = vmatprep.subr.mxu0 0.0
    %1007 = vmatpush1.msra.mxu0 0.0
    %1008 = vmatprep.subr.mxu0 0.0
    %1009 = vmatpush1.msra.mxu0 0.0
    %1010 = vmatprep.subr.mxu0 0.0
    %1011 = vmatpush1.msra.mxu0 0.0
    %1012 = vmatprep.subr.mxu0 0.0
    %1013 = vmatpush1.msra.mxu0 0.0
    %1014 = vmatprep.subr.mxu0 0.0
    %1015 = vmatpush1.msra.mxu0 0.0
    %1016 = vmatprep.subr.mxu0 0.0
    %1017 = vmatpush1.msra.mxu0 0.0
    %1018 = vmatprep.subr.mxu0 0.0
    %1019 = vmatpush1.msra.mxu0 0.0
    %1020 = vmatprep.subr.mxu0 0.0
    %1021 = vmatpush1.msra.mxu0 0.0
    %1022 = vmatprep.subr.mxu0 0.0
    %1023 = vmatpush1.msra.mxu0 0.0
    %1024 = vmatprep.subr.mxu0 0.0
    %1025 = vmatpush1.msra.mxu0 0.0
    %1026 = vmatprep.subr.mxu0 0.0
    %1027 = vmatpush1.msra.mxu0 0.0
    %1028 = vmatprep.subr.mxu0 0.0
    %1029 = vmatpush1.msra.mxu0 0.0
    %1030 = vmatprep.subr.mxu0 0.0
    %1031 = vmatpush1.msra.mxu0 0.0
    %1032 = vmatprep.subr.mxu0 0.0
    %1033 = vmatpush1.msra.mxu0 0.0
    %1034 = vmatprep.subr.mxu0 0.0
    %1035 = vmatpush1.msra.mxu0 0.0
    %1036 = vmatprep.mubr.f32.mxu0 0.0
    %1037 = vmatmul.mubr.f32.gmra.mrb[0].mxu0 %v938
    %v1038 = vpop.f32.mrb[0].mxu0
    %v1039 = vadd.f32 %v916, %v1038
    %v1040 = vpop.f32.mrb[0].mxu0
    %v1041 = vadd.f32 %v916, %v1040
    %1042 = vmatprep.mubr.f32.mxu0 0.0
    %1043 = vmatmul.mubr.f32.gmra.mrb[0].mxu0 %v940
    %v1044 = vpop.f32.mrb[0].mxu0
    %v1045 = vadd.f32 %v921, %v1044
    %v1046 = vpop.f32.mrb[0].mxu0
    %v1047 = vadd.f32 %v921, %v1046
    %1048 = vmatprep.mubr.f32.mxu0 0.0
    %1049 = vmatmul.mubr.f32.gmra.mrb[0].mxu0 %v942
    %v1050 = vpop.f32.mrb[0].mxu0
    %v1051 = vadd.f32 %v926, %v1050
    %v1052 = vpop.f32.mrb[0].mxu0
    %v1053 = vadd.f32 %v926, %v1052
    %1054 = vmatprep.mubr.f32.mxu0 0.0
    %1055 = vmatmul.mubr.f32.gmra.mrb[0].mxu0 %v944
    %v1056 = vpop.f32.mrb[0].mxu0
    %v1057 = vadd.f32 %v931, %v1056
    %v1058 = vpop.f32.mrb[0].mxu0
    %v1059 = vadd.f32 %v931, %v1058
    %1060 = vmatprep.mubr.f32.mxu0 0.0
    %1061 = vmatmul.mubr.f32.gmra.mrb[0].mxu0 %v946
    %v1062 = vpop.f32.mrb[0].mxu0
    %v1063 = vadd.f32 %v936, %v1062
    %v1064 = vpop.f32.mrb[0].mxu0
    %v1065 = vadd.f32 %v936, %v1064
    %1066 = vdwg.mxu0
    %1067 = vmatprep.subr.mxu0 %v884
    %1068 = vmatpush1.msra.mxu0 %v883
    %1069 = vmatprep.subr.mxu0 %v892
    %1070 = vmatpush1.msra.mxu0 %v891
    %1071 = vmatprep.subr.mxu0 %v900
    %1072 = vmatpush1.msra.mxu0 %v899
    %1073 = vmatprep.subr.mxu0 %v958
    %1074 = vmatpush1.msra.mxu0 %v955
    %1075 = vmatprep.subr.mxu0 0.0
    %1076 = vmatpush1.msra.mxu0 0.0
    %1077 = vmatprep.subr.mxu0 0.0
    %1078 = vmatpush1.msra.mxu0 0.0
    %1079 = vmatprep.subr.mxu0 0.0
    %1080 = vmatpush1.msra.mxu0 0.0
    %1081 = vmatprep.subr.mxu0 0.0
    %1082 = vmatpush1.msra.mxu0 0.0
    %1083 = vmatprep.subr.mxu0 0.0
    %1084 = vmatpush1.msra.mxu0 0.0
    %1085 = vmatprep.subr.mxu0 0.0
    %1086 = vmatpush1.msra.mxu0 0.0
    %1087 = vmatprep.subr.mxu0 0.0
    %1088 = vmatpush1.msra.mxu0 0.0
    %1089 = vmatprep.subr.mxu0 0.0
    %1090 = vmatpush1.msra.mxu0 0.0
    %1091 = vmatprep.subr.mxu0 0.0
    %1092 = vmatpush1.msra.mxu0 0.0
    %1093 = vmatprep.subr.mxu0 0.0
    %1094 = vmatpush1.msra.mxu0 0.0
    %1095 = vmatprep.subr.mxu0 0.0
    %1096 = vmatpush1.msra.mxu0 0.0
    %1097 = vmatprep.subr.mxu0 0.0
    %1098 = vmatpush1.msra.mxu0 0.0
    %1099 = vmatprep.subr.mxu0 0.0
    %1100 = vmatpush1.msra.mxu0 0.0
    %1101 = vmatprep.subr.mxu0 0.0
    %1102 = vmatpush1.msra.mxu0 0.0
    %1103 = vmatprep.subr.mxu0 0.0
    %1104 = vmatpush1.msra.mxu0 0.0
    %1105 = vmatprep.subr.mxu0 0.0
    %1106 = vmatpush1.msra.mxu0 0.0
    %1107 = vmatprep.subr.mxu0 0.0
    %1108 = vmatpush1.msra.mxu0 0.0
    %1109 = vmatprep.subr.mxu0 0.0
    %1110 = vmatpush1.msra.mxu0 0.0
    %1111 = vmatprep.subr.mxu0 0.0
    %1112 = vmatpush1.msra.mxu0 0.0
    %1113 = vmatprep.subr.mxu0 0.0
    %1114 = vmatpush1.msra.mxu0 0.0
    %1115 = vmatprep.subr.mxu0 0.0
    %1116 = vmatpush1.msra.mxu0 0.0
    %1117 = vmatprep.subr.mxu0 0.0
    %1118 = vmatpush1.msra.mxu0 0.0
    %1119 = vmatprep.subr.mxu0 0.0
    %1120 = vmatpush1.msra.mxu0 0.0
    %1121 = vmatprep.subr.mxu0 0.0
    %1122 = vmatpush1.msra.mxu0 0.0
    %1123 = vmatprep.subr.mxu0 0.0
    %1124 = vmatpush1.msra.mxu0 0.0
    %1125 = vmatprep.subr.mxu0 0.0
    %1126 = vmatpush1.msra.mxu0 0.0
    %1127 = vmatprep.subr.mxu0 0.0
    %1128 = vmatpush1.msra.mxu0 0.0
    %1129 = vmatprep.subr.mxu0 0.0
    %1130 = vmatpush1.msra.mxu0 0.0
    %1131 = vmatprep.mubr.f32.mxu0 0.0
    %1132 = vmatmul.mubr.f32.gmra.mrb[0].mxu0 %v938
    %v1133 = vpop.f32.mrb[0].mxu0
    %v1134 = vadd.f32 %v916, %v1133
    %v1135 = vpop.f32.mrb[0].mxu0
    %v1136 = vadd.f32 %v916, %v1135
    %1137 = vmatprep.mubr.f32.mxu0 0.0
    %1138 = vmatmul.mubr.f32.gmra.mrb[0].mxu0 %v940
    %v1139 = vpop.f32.mrb[0].mxu0
    %v1140 = vadd.f32 %v921, %v1139
    %v1141 = vpop.f32.mrb[0].mxu0
    %v1142 = vadd.f32 %v921, %v1141
    %1143 = vmatprep.mubr.f32.mxu0 0.0
    %1144 = vmatmul.mubr.f32.gmra.mrb[0].mxu0 %v942
    %v1145 = vpop.f32.mrb[0].mxu0
    %v1146 = vadd.f32 %v926, %v1145
    %v1147 = vpop.f32.mrb[0].mxu0
    %v1148 = vadd.f32 %v926, %v1147
    %1149 = vmatprep.mubr.f32.mxu0 0.0
    %1150 = vmatmul.mubr.f32.gmra.mrb[0].mxu0 %v944
    %v1151 = vpop.f32.mrb[0].mxu0
    %v1152 = vadd.f32 %v931, %v1151
    %v1153 = vpop.f32.mrb[0].mxu0
    %v1154 = vadd.f32 %v931, %v1153
    %1155 = vmatprep.mubr.f32.mxu0 0.0
    %1156 = vmatmul.mubr.f32.gmra.mrb[0].mxu0 %v946
    %v1157 = vpop.f32.mrb[0].mxu0
    %v1158 = vadd.f32 %v936, %v1157
    %v1159 = vpop.f32.mrb[0].mxu0
    %v1160 = vadd.f32 %v936, %v1159
    %1161 = vdwg.mxu0
    %1162 = vmatprep.subr.mxu0 %v886
    %1163 = vmatpush1.msra.mxu0 %v885
    %1164 = vmatprep.subr.mxu0 %v894
    %1165 = vmatpush1.msra.mxu0 %v893
    %1166 = vmatprep.subr.mxu0 %v902
    %1167 = vmatpush1.msra.mxu0 %v901
    %1168 = vmatprep.subr.mxu0 %v964
    %1169 = vmatpush1.msra.mxu0 %v961
    %1170 = vmatprep.subr.mxu0 0.0
    %1171 = vmatpush1.msra.mxu0 0.0
    %1172 = vmatprep.subr.mxu0 0.0
    %1173 = vmatpush1.msra.mxu0 0.0
    %1174 = vmatprep.subr.mxu0 0.0
    %1175 = vmatpush1.msra.mxu0 0.0
    %1176 = vmatprep.subr.mxu0 0.0
    %1177 = vmatpush1.msra.mxu0 0.0
    %1178 = vmatprep.subr.mxu0 0.0
    %1179 = vmatpush1.msra.mxu0 0.0
    %1180 = vmatprep.subr.mxu0 0.0
    %1181 = vmatpush1.msra.mxu0 0.0
    %1182 = vmatprep.subr.mxu0 0.0
    %1183 = vmatpush1.msra.mxu0 0.0
    %1184 = vmatprep.subr.mxu0 0.0
    %1185 = vmatpush1.msra.mxu0 0.0
    %1186 = vmatprep.subr.mxu0 0.0
    %1187 = vmatpush1.msra.mxu0 0.0
    %1188 = vmatprep.subr.mxu0 0.0
    %1189 = vmatpush1.msra.mxu0 0.0
    %1190 = vmatprep.subr.mxu0 0.0
    %1191 = vmatpush1.msra.mxu0 0.0
    %1192 = vmatprep.subr.mxu0 0.0
    %1193 = vmatpush1.msra.mxu0 0.0
    %1194 = vmatprep.subr.mxu0 0.0
    %1195 = vmatpush1.msra.mxu0 0.0
    %1196 = vmatprep.subr.mxu0 0.0
    %1197 = vmatpush1.msra.mxu0 0.0
    %1198 = vmatprep.subr.mxu0 0.0
    %1199 = vmatpush1.msra.mxu0 0.0
    %1200 = vmatprep.subr.mxu0 0.0
    %1201 = vmatpush1.msra.mxu0 0.0
    %1202 = vmatprep.subr.mxu0 0.0
    %1203 = vmatpush1.msra.mxu0 0.0
    %1204 = vmatprep.subr.mxu0 0.0
    %1205 = vmatpush1.msra.mxu0 0.0
    %1206 = vmatprep.subr.mxu0 0.0
    %1207 = vmatpush1.msra.mxu0 0.0
    %1208 = vmatprep.subr.mxu0 0.0
    %1209 = vmatpush1.msra.mxu0 0.0
    %1210 = vmatprep.subr.mxu0 0.0
    %1211 = vmatpush1.msra.mxu0 0.0
    %1212 = vmatprep.subr.mxu0 0.0
    %1213 = vmatpush1.msra.mxu0 0.0
    %1214 = vmatprep.subr.mxu0 0.0
    %1215 = vmatpush1.msra.mxu0 0.0
    %1216 = vmatprep.subr.mxu0 0.0
    %1217 = vmatpush1.msra.mxu0 0.0
    %1218 = vmatprep.subr.mxu0 0.0
    %1219 = vmatpush1.msra.mxu0 0.0
    %1220 = vmatprep.subr.mxu0 0.0
    %1221 = vmatpush1.msra.mxu0 0.0
    %1222 = vmatprep.subr.mxu0 0.0
    %1223 = vmatpush1.msra.mxu0 0.0
    %1224 = vmatprep.subr.mxu0 0.0
    %1225 = vmatpush1.msra.mxu0 0.0
    %1226 = vmatprep.mubr.f32.mxu0 0.0
    %1227 = vmatmul.mubr.f32.gmra.mrb[0].mxu0 %v938
    %v1228 = vpop.f32.mrb[0].mxu0
    %v1229 = vadd.f32 %v916, %v1228
    %v1230 = vpop.f32.mrb[0].mxu0
    %v1231 = vadd.f32 %v916, %v1230
    %1232 = vmatprep.mubr.f32.mxu0 0.0
    %1233 = vmatmul.mubr.f32.gmra.mrb[0].mxu0 %v940
    %v1234 = vpop.f32.mrb[0].mxu0
    %v1235 = vadd.f32 %v921, %v1234
    %v1236 = vpop.f32.mrb[0].mxu0
    %v1237 = vadd.f32 %v921, %v1236
    %1238 = vmatprep.mubr.f32.mxu0 0.0
    %1239 = vmatmul.mubr.f32.gmra.mrb[0].mxu0 %v942
    %v1240 = vpop.f32.mrb[0].mxu0
    %v1241 = vadd.f32 %v926, %v1240
    %v1242 = vpop.f32.mrb[0].mxu0
    %v1243 = vadd.f32 %v926, %v1242
    %1244 = vmatprep.mubr.f32.mxu0 0.0
    %1245 = vmatmul.mubr.f32.gmra.mrb[0].mxu0 %v944
    %v1246 = vpop.f32.mrb[0].mxu0
    %v1247 = vadd.f32 %v931, %v1246
    %v1248 = vpop.f32.mrb[0].mxu0
    %v1249 = vadd.f32 %v931, %v1248
    %1250 = vmatprep.mubr.f32.mxu0 0.0
    %1251 = vmatmul.mubr.f32.gmra.mrb[0].mxu0 %v946
    %v1252 = vpop.f32.mrb[0].mxu0
    %v1253 = vadd.f32 %v936, %v1252
    %v1254 = vpop.f32.mrb[0].mxu0
    %v1255 = vadd.f32 %v936, %v1254
    %1256 = vdwg.mxu0
    %1257 = vmatprep.subr.mxu0 %v888
    %1258 = vmatpush1.msra.mxu0 %v887
    %1259 = vmatprep.subr.mxu0 %v896
    %1260 = vmatpush1.msra.mxu0 %v895
    %1261 = vmatprep.subr.mxu0 %v904
    %1262 = vmatpush1.msra.mxu0 %v903
    %1263 = vmatprep.subr.mxu0 %v970
    %1264 = vmatpush1.msra.mxu0 %v967
    %1265 = vmatprep.subr.mxu0 0.0
    %1266 = vmatpush1.msra.mxu0 0.0
    %1267 = vmatprep.subr.mxu0 0.0
    %1268 = vmatpush1.msra.mxu0 0.0
    %1269 = vmatprep.subr.mxu0 0.0
    %1270 = vmatpush1.msra.mxu0 0.0
    %1271 = vmatprep.subr.mxu0 0.0
    %1272 = vmatpush1.msra.mxu0 0.0
    %1273 = vmatprep.subr.mxu0 0.0
    %1274 = vmatpush1.msra.mxu0 0.0
    %1275 = vmatprep.subr.mxu0 0.0
    %1276 = vmatpush1.msra.mxu0 0.0
    %1277 = vmatprep.subr.mxu0 0.0
    %1278 = vmatpush1.msra.mxu0 0.0
    %1279 = vmatprep.subr.mxu0 0.0
    %1280 = vmatpush1.msra.mxu0 0.0
    %1281 = vmatprep.subr.mxu0 0.0
    %1282 = vmatpush1.msra.mxu0 0.0
    %1283 = vmatprep.subr.mxu0 0.0
    %1284 = vmatpush1.msra.mxu0 0.0
    %1285 = vmatprep.subr.mxu0 0.0
    %1286 = vmatpush1.msra.mxu0 0.0
    %1287 = vmatprep.subr.mxu0 0.0
    %1288 = vmatpush1.msra.mxu0 0.0
    %1289 = vmatprep.subr.mxu0 0.0
    %1290 = vmatpush1.msra.mxu0 0.0
    %1291 = vmatprep.subr.mxu0 0.0
    %1292 = vmatpush1.msra.mxu0 0.0
    %1293 = vmatprep.subr.mxu0 0.0
    %1294 = vmatpush1.msra.mxu0 0.0
    %1295 = vmatprep.subr.mxu0 0.0
    %1296 = vmatpush1.msra.mxu0 0.0
    %1297 = vmatprep.subr.mxu0 0.0
    %1298 = vmatpush1.msra.mxu0 0.0
    %1299 = vmatprep.subr.mxu0 0.0
    %1300 = vmatpush1.msra.mxu0 0.0
    %1301 = vmatprep.subr.mxu0 0.0
    %1302 = vmatpush1.msra.mxu0 0.0
    %1303 = vmatprep.subr.mxu0 0.0
    %1304 = vmatpush1.msra.mxu0 0.0
    %1305 = vmatprep.subr.mxu0 0.0
    %1306 = vmatpush1.msra.mxu0 0.0
    %1307 = vmatprep.subr.mxu0 0.0
    %1308 = vmatpush1.msra.mxu0 0.0
    %1309 = vmatprep.subr.mxu0 0.0
    %1310 = vmatpush1.msra.mxu0 0.0
    %1311 = vmatprep.subr.mxu0 0.0
    %1312 = vmatpush1.msra.mxu0 0.0
    %1313 = vmatprep.subr.mxu0 0.0
    %1314 = vmatpush1.msra.mxu0 0.0
    %1315 = vmatprep.subr.mxu0 0.0
    %1316 = vmatpush1.msra.mxu0 0.0
    %1317 = vmatprep.subr.mxu0 0.0
    %1318 = vmatpush1.msra.mxu0 0.0
    %1319 = vmatprep.subr.mxu0 0.0
    %1320 = vmatpush1.msra.mxu0 0.0
    %1321 = vmatprep.mubr.f32.mxu0 0.0
    %1322 = vmatmul.mubr.f32.gmra.mrb[0].mxu0 %v938
    %v1323 = vpop.f32.mrb[0].mxu0
    %v1324 = vadd.f32 %v916, %v1323
    %v1325 = vpop.f32.mrb[0].mxu0
    %v1326 = vadd.f32 %v916, %v1325
    %1327 = vmatprep.mubr.f32.mxu0 0.0
    %1328 = vmatmul.mubr.f32.gmra.mrb[0].mxu0 %v940
    %v1329 = vpop.f32.mrb[0].mxu0
    %v1330 = vadd.f32 %v921, %v1329
    %v1331 = vpop.f32.mrb[0].mxu0
    %v1332 = vadd.f32 %v921, %v1331
    %1333 = vmatprep.mubr.f32.mxu0 0.0
    %1334 = vmatmul.mubr.f32.gmra.mrb[0].mxu0 %v942
    %v1335 = vpop.f32.mrb[0].mxu0
    %v1336 = vadd.f32 %v926, %v1335
    %v1337 = vpop.f32.mrb[0].mxu0
    %v1338 = vadd.f32 %v926, %v1337
    %1339 = vmatprep.mubr.f32.mxu0 0.0
    %1340 = vmatmul.mubr.f32.gmra.mrb[0].mxu0 %v944
    %v1341 = vpop.f32.mrb[0].mxu0
    %v1342 = vadd.f32 %v931, %v1341
    %v1343 = vpop.f32.mrb[0].mxu0
    %v1344 = vadd.f32 %v931, %v1343
    %1345 = vmatprep.mubr.f32.mxu0 0.0
    %1346 = vmatmul.mubr.f32.gmra.mrb[0].mxu0 %v946
    %v1347 = vpop.f32.mrb[0].mxu0
    %v1348 = vadd.f32 %v936, %v1347
    %v1349 = vpop.f32.mrb[0].mxu0
    %v1350 = vadd.f32 %v936, %v1349
    %1351 = vdwg.mxu0
    %v1352 = vtanh.pop %v1039
    %v1353 = vtanh.pop %v1041
    %v1354 = vtanh.pop %v1134
    %v1355 = vtanh.pop %v1136
    %v1356 = vtanh.pop %v1229
    %v1357 = vtanh.pop %v1231
    %v1358 = vtanh.pop %v1324
    %v1359 = vtanh.pop %v1326
    %v1360 = vtanh.pop %v1045
    %v1361 = vtanh.pop %v1047
    %v1362 = vtanh.pop %v1140
    %v1363 = vtanh.pop %v1142
    %v1364 = vtanh.pop %v1235
    %v1365 = vtanh.pop %v1237
    %v1366 = vtanh.pop %v1330
    %v1367 = vtanh.pop %v1332
    %v1368 = vtanh.pop %v1051
    %v1369 = vtanh.pop %v1053
    %v1370 = vtanh.pop %v1146
    %v1371 = vtanh.pop %v1148
    %v1372 = vtanh.pop %v1241
    %v1373 = vtanh.pop %v1243
    %v1374 = vtanh.pop %v1336
    %v1375 = vtanh.pop %v1338
    %v1376 = vtanh.pop %v1057
    %v1377 = vtanh.pop %v1059
    %v1378 = vtanh.pop %v1152
    %v1379 = vtanh.pop %v1154
    %v1380 = vtanh.pop %v1247
    %v1381 = vtanh.pop %v1249
    %v1382 = vtanh.pop %v1342
    %v1383 = vtanh.pop %v1344
    %v1384 = vtanh.pop %v1063
    %v1385 = vtanh.pop %v1065
    %v1386 = vtanh.pop %v1158
    %v1387 = vtanh.pop %v1160
    %v1388 = vtanh.pop %v1253
    %v1389 = vtanh.pop %v1255
    %v1390 = vtanh.pop %v1348
    %v1391 = vtanh.pop %v1350
    %1392 = vst [vmem:[#allocation2] sm:$0xff] %v1352
    %1393 = vst [vmem:[#allocation2 + $0x8] sm:$0xff] %v1353
    %1394 = vst [vmem:[#allocation2 + $0x10] sm:$0xff] %v1354
    %1395 = vst [vmem:[#allocation2 + $0x18] sm:$0xff] %v1355
    %1396 = vst [vmem:[#allocation2 + $0x20] sm:$0xff] %v1356
    %1397 = vst [vmem:[#allocation2 + $0x28] sm:$0xff] %v1357
    %1398 = vst [vmem:[#allocation2 + $0x30] sm:$0xff] %v1358
    %1399 = vst [vmem:[#allocation2 + $0x38] sm:$0xff] %v1359
    %1400 = vst [vmem:[#allocation2 + $0x40] sm:$0xff] %v1360
    %1401 = vst [vmem:[#allocation2 + $0x48] sm:$0xff] %v1361
    %1402 = vst [vmem:[#allocation2 + $0x50] sm:$0xff] %v1362
    %1403 = vst [vmem:[#allocation2 + $0x58] sm:$0xff] %v1363
    %1404 = vst [vmem:[#allocation2 + $0x60] sm:$0xff] %v1364
    %1405 = vst [vmem:[#allocation2 + $0x68] sm:$0xff] %v1365
    %1406 = vst [vmem:[#allocation2 + $0x70] sm:$0xff] %v1366
    %1407 = vst [vmem:[#allocation2 + $0x78] sm:$0xff] %v1367
    %1408 = vst [vmem:[#allocation2 + $0x80] sm:$0xff] %v1368
    %1409 = vst [vmem:[#allocation2 + $0x88] sm:$0xff] %v1369
    %1410 = vst [vmem:[#allocation2 + $0x90] sm:$0xff] %v1370
    %1411 = vst [vmem:[#allocation2 + $0x98] sm:$0xff] %v1371
    %1412 = vst [vmem:[#allocation2 + $0xa0] sm:$0xff] %v1372
    %1413 = vst [vmem:[#allocation2 + $0xa8] sm:$0xff] %v1373
    %1414 = vst [vmem:[#allocation2 + $0xb0] sm:$0xff] %v1374
    %1415 = vst [vmem:[#allocation2 + $0xb8] sm:$0xff] %v1375
    %1416 = vst [vmem:[#allocation2 + $0xc0] sm:$0xff] %v1376
    %1417 = vst [vmem:[#allocation2 + $0xc8] sm:$0xff] %v1377
    %1418 = vst [vmem:[#allocation2 + $0xd0] sm:$0xff] %v1378
    %1419 = vst [vmem:[#allocation2 + $0xd8] sm:$0xff] %v1379
    %1420 = vst [vmem:[#allocation2 + $0xe0] sm:$0xff] %v1380
    %1421 = vst [vmem:[#allocation2 + $0xe8] sm:$0xff] %v1381
    %1422 = vst [vmem:[#allocation2 + $0xf0] sm:$0xff] %v1382
    %1423 = vst [vmem:[#allocation2 + $0xf8] sm:$0xff] %v1383
    %1424 = vst [vmem:[#allocation2 + $0x100] sm:$0xff] %v1384
    %1425 = vst [vmem:[#allocation2 + $0x108] sm:$0xff] %v1385
    %1426 = vst [vmem:[#allocation2 + $0x110] sm:$0xff] %v1386
    %1427 = vst [vmem:[#allocation2 + $0x118] sm:$0xff] %v1387
    %1428 = vst [vmem:[#allocation2 + $0x120] sm:$0xff] %v1388
    %1429 = vst [vmem:[#allocation2 + $0x128] sm:$0xff] %v1389
    %1430 = vst [vmem:[#allocation2 + $0x130] sm:$0xff] %v1390
    %1431 = vst [vmem:[#allocation2 + $0x138] sm:$0xff] %v1391
    // Predicated region
    $region10: #{tpu_custom_call.1} parent=1 // pred_check
      _
    $region11: #{tpu_custom_call.1} parent=1 // pred_check_branch
      %1433 = sbr.rel (0) target = $region13
    $region12: #{tpu_custom_call.1} parent=1 // pred_region
      %s1435 = ssub.s32 5120, 5120
      %1436 = vsyncadd [#allocation3], %s1435
      %s1437 = sshll.u32 [#allocation2], 4
      %s1438 = int_to_ptr.vmem [resolvable:$true] %s1437
      %1443 = dma.vmem_to_hbm [thread:$0]  %s1438, 5120, %s2, [#allocation3], 1024, 1024, 64
    $region13: #{tpu_custom_call.1} parent=1 // pred_fallthru
      _
    // Predicated region
    $region14: #{tpu_custom_call.1} parent=1 // pred_check
      _
    $region15: #{tpu_custom_call.1} parent=1 // pred_check_branch
      %1445 = sbr.rel (0) target = $region17
    $region16: #{tpu_custom_call.1} parent=1 // pred_region
      %1446 = dma.done [#allocation3], 5120
    $region17: #{tpu_custom_call.1} parent=1 // pred_fallthru
      _
    %1447 = vsyncpa [#allocation3], 1

</llo_original>
